<compile_context>
chip_gen: v7x
topology: tpu7x:2x2x1
jax: 0.10.0
libtpu: 0.0.40
codegen_flags: <defaults>
</compile_context>

<pallas_src>
import functools

import jax
import jax.numpy as jnp
from jax.experimental import pallas as pl
from jax.experimental.pallas import tpu as pltpu

DROPOUT_P = 0.1


def _inner_product_decoder_kernel(z_row_ref, z_col_ref, adj_ref):
    # (TM, D) x (TN, D) -> (TM, TN), contracting the shared last (D) dim.
    logits = jax.lax.dot_general(
        z_row_ref[...],
        z_col_ref[...],
        dimension_numbers=(((1,), (1,)), ((), ())),
        preferred_element_type=jnp.float32,
    )
    adj_ref[...] = jax.nn.sigmoid(logits).astype(adj_ref.dtype)


@functools.partial(jax.jit, static_argnames=("dropout_p", "training", "tile_m", "tile_n"))
def _decode_padded(z_pad, *, dropout_p, training, tile_m, tile_n):
    n_pad, d = z_pad.shape
    grid = (n_pad // tile_m, n_pad // tile_n)
    return pl.pallas_call(
        _inner_product_decoder_kernel,
        out_shape=jax.ShapeDtypeStruct((n_pad, n_pad), z_pad.dtype),
        grid_spec=pltpu.PrefetchScalarGridSpec(
            num_scalar_prefetch=0,
            grid=grid,
            in_specs=[
                pl.BlockSpec((tile_m, d), lambda i, j: (i, 0)),  # row block of z
                pl.BlockSpec((tile_n, d), lambda i, j: (j, 0)),  # col block of z
            ],
            out_specs=pl.BlockSpec((tile_m, tile_n), lambda i, j: (i, j)),
        ),
        compiler_params=pltpu.CompilerParams(
            dimension_semantics=("parallel", "parallel"),
            vmem_limit_bytes=64 * 1024 * 1024,
        ),
    )(z_pad, z_pad)


def inner_product_decoder(z, *, key=None, dropout_p=DROPOUT_P, training=True,
                          tile_m=256, tile_n=256):
    """z: (N, D) float array -> (N, N) reconstructed adjacency = sigmoid(d(z) @ d(z).T)."""
    n, d = z.shape

    # --- dropout prologue (O(N*D), plain JAX): one mask per element of z, so
    # --- the same mask is seen whether the row is used as LHS or RHS tile.
    # TODO(synk): mask does not bit-match torch's RNG; semantics (zero w.p. p,
    # scale 1/(1-p)) are identical.
    if training and dropout_p > 0.0:
        if key is None:
            key = jax.random.PRNGKey(0)
        keep = jax.random.bernoulli(key, 1.0 - dropout_p, z.shape)
        z = jnp.where(keep, z * (1.0 / (1.0 - dropout_p)), 0.0).astype(z.dtype)

    # Pad N up to a tile multiple so BlockSpecs are well-formed; padded rows are
    # zero and the padded region of adj is sliced away below.
    tile = max(tile_m, tile_n)
    n_pad = ((n + tile - 1) // tile) * tile
    if n_pad != n:
        z = jnp.pad(z, ((0, n_pad - n), (0, 0)))

    adj_pad = _decode_padded(z, dropout_p=dropout_p, training=training,
                             tile_m=tile_m, tile_n=tile_n)
    return adj_pad[:n, :n]


if __name__ == "__main__":
    key = jax.random.PRNGKey(0)
    k_data, k_drop = jax.random.split(key)

    n, d = 8, 32                      # num_nodes=8, latent_dim=32
    z = jax.random.normal(k_data, (n, d), dtype=jnp.float32)

    # Forward pass with dropout (training semantics, as in the PyTorch module).
    adj = inner_product_decoder(z, key=k_drop, training=True)
    adj = jax.block_until_ready(adj)
    assert adj.shape == (n, n)
    assert adj.dtype == jnp.float32
    assert bool(jnp.all((adj >= 0.0) & (adj <= 1.0)))
    # dropout mask is shared between LHS and RHS uses of z -> output symmetric
    assert bool(jnp.allclose(adj, adj.T, atol=1e-5))

    # Deterministic check (no dropout) against a pure-JAX reference.
    adj_eval = jax.block_until_ready(inner_product_decoder(z, training=False))
    ref = jax.nn.sigmoid(z @ z.T)
    assert bool(jnp.allclose(adj_eval, ref, atol=1e-5, rtol=1e-5))

    print("KERNEL_OK")
</pallas_src>

<mosaic_0001>
module attributes {stable_mosaic.version = 11 : i64} {
  func.func @_inner_product_decoder_kernel(%arg0: i32, %arg1: i32, %arg2: memref<256x32xf32, #tpu.memory_space<vmem>>, %arg3: memref<256x32xf32, #tpu.memory_space<vmem>>, %arg4: memref<256x256xf32, #tpu.memory_space<vmem>>) attributes {dimension_semantics = [#tpu.dimension_semantics<parallel>, #tpu.dimension_semantics<parallel>], iteration_bounds = array<i64: 1, 1>, scalar_prefetch = 0 : i64, scratch_operands = 0 : i64, tpu.core_type = #tpu.core_type<tc>, window_params = [{transform_indices = @transform_0, window_bounds = array<i64: 256, 32>}, {transform_indices = @transform_1, window_bounds = array<i64: 256, 32>}, {transform_indices = @transform_2, window_bounds = array<i64: 256, 256>}]} {
    %c0 = arith.constant 0 : index
    %c0_0 = arith.constant 0 : index
    %0 = vector.load %arg2[%c0, %c0_0] : memref<256x32xf32, #tpu.memory_space<vmem>>, vector<256x32xf32>
    %c0_1 = arith.constant 0 : index
    %c0_2 = arith.constant 0 : index
    %1 = vector.load %arg3[%c0_1, %c0_2] : memref<256x32xf32, #tpu.memory_space<vmem>>, vector<256x32xf32>
    %cst = arith.constant dense<0.000000e+00> : vector<256x256xf32>
    %2 = tpu.matmul %0, %1, %cst {dimension_numbers = #tpu.dot_dimension_numbers<[1], [1], [0], [0], [0, 0, 1, 0], [], []>} : vector<256x32xf32>, vector<256x32xf32>, vector<256x256xf32> -> vector<256x256xf32>
    %3 = arith.negf %2 : vector<256x256xf32>
    %4 = math.exp %3 : vector<256x256xf32>
    %cst_3 = arith.constant 1.000000e+00 : f32
    %5 = vector.broadcast %cst_3 : f32 to vector<256x256xf32>
    %6 = arith.addf %5, %4 : vector<256x256xf32>
    %7 = arith.divf %5, %6 : vector<256x256xf32>
    %c0_4 = arith.constant 0 : index
    %c0_5 = arith.constant 0 : index
    %8 = vector.load %arg4[%c0_4, %c0_5] : memref<256x256xf32, #tpu.memory_space<vmem>>, vector<256x256xf32>
    tpu.vector_store %arg4[%c0_4, %c0_5], %7 {strides = array<i32>} : memref<256x256xf32, #tpu.memory_space<vmem>>, vector<256x256xf32>,
    return
  }
  func.func @transform_0(%arg0: i32, %arg1: i32) -> (i32, i32) {
    %c0_i32 = arith.constant 0 : i32
    %c0_i32_0 = arith.constant 0 : i32
    return %arg0, %c0_i32 : i32, i32
  }
  func.func @transform_1(%arg0: i32, %arg1: i32) -> (i32, i32) {
    %c0_i32 = arith.constant 0 : i32
    %c0_i32_0 = arith.constant 0 : i32
    return %arg1, %c0_i32 : i32, i32
  }
  func.func @transform_2(%arg0: i32, %arg1: i32) -> (i32, i32) {
    %c0_i32 = arith.constant 0 : i32
    return %arg0, %arg1 : i32, i32
  }
}

</mosaic_0001>

<llo_original>
// kernel: _decode_padded.1
$region0: #{_decode_padded.1}
  #allocation0 [shape = 'u32[]', space=smem, size = 0x4, offset = 0x4, fixed_abs, tag = 'smem constant byte address 0x4 - core index']
  #allocation1 [shape = 'u32[144,128]{1,0:T(1,128)}', space=vmem, size = 0x12000, scoped, tag = 'internal scratch']
  %s0 = inlined_call_operand.hbm [shape: f32[256,32], index: 0, kind: input, shape index: {}, may-alias: {0,1}]
  %s1 = inlined_call_operand.hbm [shape: f32[256,32], index: 1, kind: input, shape index: {}, may-alias: {0,1}]
  %s2 = inlined_call_operand.hbm [shape: f32[256,256], index: 2, kind: output, shape index: {}]
  %s3 = sld [smem:[#allocation0]]
  $region26: #{_decode_padded.1} parent=0
    _
  %s5 = ssub.s32 1, %s3
  %s6 = scalar_select 0, %s5, %s3
  $region1: #{_decode_padded.1} parent=0
    #allocation2 [shape = 'u8[131072]{0}', space=vmem, size = 0x20000, scoped, tag = 'input window, operand 0, single buffered']
    #allocation3 [shape = 's32[1]{0}', space=sflag, size = 0x4, scoped, tag = 'scoped memory for _decode_padded.1']
    #allocation4 [shape = 's32[1]{0}', space=sflag, size = 0x4, scoped, tag = 'scoped memory for _decode_padded.1']
    #allocation5 [shape = 'u8[131072]{0}', space=vmem, size = 0x20000, scoped, tag = 'input window, operand 1, single buffered']
    #allocation6 [shape = 's32[1]{0}', space=sflag, size = 0x4, scoped, tag = 'scoped memory for _decode_padded.1']
    #allocation7 [shape = 'u8[262144]{0}', space=vmem, size = 0x40000, scoped, tag = 'output window, operand 0, single buffered']
    %7 = vsyncpa [#allocation3], 0
    %8 = vsyncpa [#allocation6], 0
    %9 = vsyncpa [#allocation4], 0
    // Predicated region
    $region2: #{_decode_padded.1} parent=1 // pred_check
      _
    $region3: #{_decode_padded.1} parent=1 // pred_check_branch
      %11 = sbr.rel (0) target = $region5
    $region4: #{_decode_padded.1} parent=1 // pred_region
      %s13 = ssub.s32 4096, 4096
      %14 = vsyncadd [#allocation3], %s13
      %s15 = sshll.u32 [#allocation2], 4
      %s16 = int_to_ptr.vmem [resolvable:$true] %s15
      %21 = dma.hbm_to_vmem [thread:$0]  %s0, 4096, %s16, [#allocation3], 128, 128, 8
    $region5: #{_decode_padded.1} parent=1 // pred_fallthru
      _
    // Predicated region
    $region6: #{_decode_padded.1} parent=1 // pred_check
      _
    $region7: #{_decode_padded.1} parent=1 // pred_check_branch
      %23 = sbr.rel (0) target = $region9
    $region8: #{_decode_padded.1} parent=1 // pred_region
      %s25 = ssub.s32 4096, 4096
      %26 = vsyncadd [#allocation6], %s25
      %s27 = sshll.u32 [#allocation5], 4
      %s28 = int_to_ptr.vmem [resolvable:$true] %s27
      %33 = dma.hbm_to_vmem [thread:$0]  %s1, 4096, %s28, [#allocation6], 128, 128, 8
    $region9: #{_decode_padded.1} parent=1 // pred_fallthru
      _
    // Predicated region
    $region10: #{_decode_padded.1} parent=1 // pred_check
      _
    $region11: #{_decode_padded.1} parent=1 // pred_check_branch
      %35 = sbr.rel (0) target = $region13
    $region12: #{_decode_padded.1} parent=1 // pred_region
      %36 = dma.done [#allocation3], 4096
    $region13: #{_decode_padded.1} parent=1 // pred_fallthru
      _
    // Predicated region
    $region14: #{_decode_padded.1} parent=1 // pred_check
      _
    $region15: #{_decode_padded.1} parent=1 // pred_check_branch
      %38 = sbr.rel (0) target = $region17
    $region16: #{_decode_padded.1} parent=1 // pred_region
      %39 = dma.done [#allocation6], 4096
    $region17: #{_decode_padded.1} parent=1 // pred_fallthru
      _
    %v40 = vld [vmem:[#allocation2] sm:$0xff]
    %v41 = vld [vmem:[#allocation2 + $0x8] sm:$0xff]
    %v42 = vld [vmem:[#allocation2 + $0x10] sm:$0xff]
    %v43 = vld [vmem:[#allocation2 + $0x18] sm:$0xff]
    %v44 = vld [vmem:[#allocation2 + $0x20] sm:$0xff]
    %v45 = vld [vmem:[#allocation2 + $0x28] sm:$0xff]
    %v46 = vld [vmem:[#allocation2 + $0x30] sm:$0xff]
    %v47 = vld [vmem:[#allocation2 + $0x38] sm:$0xff]
    %v48 = vld [vmem:[#allocation2 + $0x40] sm:$0xff]
    %v49 = vld [vmem:[#allocation2 + $0x48] sm:$0xff]
    %v50 = vld [vmem:[#allocation2 + $0x50] sm:$0xff]
    %v51 = vld [vmem:[#allocation2 + $0x58] sm:$0xff]
    %v52 = vld [vmem:[#allocation2 + $0x60] sm:$0xff]
    %v53 = vld [vmem:[#allocation2 + $0x68] sm:$0xff]
    %v54 = vld [vmem:[#allocation2 + $0x70] sm:$0xff]
    %v55 = vld [vmem:[#allocation2 + $0x78] sm:$0xff]
    %v56 = vld [vmem:[#allocation2 + $0x80] sm:$0xff]
    %v57 = vld [vmem:[#allocation2 + $0x88] sm:$0xff]
    %v58 = vld [vmem:[#allocation2 + $0x90] sm:$0xff]
    %v59 = vld [vmem:[#allocation2 + $0x98] sm:$0xff]
    %v60 = vld [vmem:[#allocation2 + $0xa0] sm:$0xff]
    %v61 = vld [vmem:[#allocation2 + $0xa8] sm:$0xff]
    %v62 = vld [vmem:[#allocation2 + $0xb0] sm:$0xff]
    %v63 = vld [vmem:[#allocation2 + $0xb8] sm:$0xff]
    %v64 = vld [vmem:[#allocation2 + $0xc0] sm:$0xff]
    %v65 = vld [vmem:[#allocation2 + $0xc8] sm:$0xff]
    %v66 = vld [vmem:[#allocation2 + $0xd0] sm:$0xff]
    %v67 = vld [vmem:[#allocation2 + $0xd8] sm:$0xff]
    %v68 = vld [vmem:[#allocation2 + $0xe0] sm:$0xff]
    %v69 = vld [vmem:[#allocation2 + $0xe8] sm:$0xff]
    %v70 = vld [vmem:[#allocation2 + $0xf0] sm:$0xff]
    %v71 = vld [vmem:[#allocation2 + $0xf8] sm:$0xff]
    %v72 = vld [vmem:[#allocation5] sm:$0xff]
    %v73 = vld [vmem:[#allocation5 + $0x8] sm:$0xff]
    %v74 = vld [vmem:[#allocation5 + $0x10] sm:$0xff]
    %v75 = vld [vmem:[#allocation5 + $0x18] sm:$0xff]
    %v76 = vld [vmem:[#allocation5 + $0x20] sm:$0xff]
    %v77 = vld [vmem:[#allocation5 + $0x28] sm:$0xff]
    %v78 = vld [vmem:[#allocation5 + $0x30] sm:$0xff]
    %v79 = vld [vmem:[#allocation5 + $0x38] sm:$0xff]
    %v80 = vld [vmem:[#allocation5 + $0x40] sm:$0xff]
    %v81 = vld [vmem:[#allocation5 + $0x48] sm:$0xff]
    %v82 = vld [vmem:[#allocation5 + $0x50] sm:$0xff]
    %v83 = vld [vmem:[#allocation5 + $0x58] sm:$0xff]
    %v84 = vld [vmem:[#allocation5 + $0x60] sm:$0xff]
    %v85 = vld [vmem:[#allocation5 + $0x68] sm:$0xff]
    %v86 = vld [vmem:[#allocation5 + $0x70] sm:$0xff]
    %v87 = vld [vmem:[#allocation5 + $0x78] sm:$0xff]
    %v88 = vld [vmem:[#allocation5 + $0x80] sm:$0xff]
    %v89 = vld [vmem:[#allocation5 + $0x88] sm:$0xff]
    %v90 = vld [vmem:[#allocation5 + $0x90] sm:$0xff]
    %v91 = vld [vmem:[#allocation5 + $0x98] sm:$0xff]
    %v92 = vld [vmem:[#allocation5 + $0xa0] sm:$0xff]
    %v93 = vld [vmem:[#allocation5 + $0xa8] sm:$0xff]
    %v94 = vld [vmem:[#allocation5 + $0xb0] sm:$0xff]
    %v95 = vld [vmem:[#allocation5 + $0xb8] sm:$0xff]
    %v96 = vld [vmem:[#allocation5 + $0xc0] sm:$0xff]
    %v97 = vld [vmem:[#allocation5 + $0xc8] sm:$0xff]
    %v98 = vld [vmem:[#allocation5 + $0xd0] sm:$0xff]
    %v99 = vld [vmem:[#allocation5 + $0xd8] sm:$0xff]
    %v100 = vld [vmem:[#allocation5 + $0xe0] sm:$0xff]
    %v101 = vld [vmem:[#allocation5 + $0xe8] sm:$0xff]
    %v102 = vld [vmem:[#allocation5 + $0xf0] sm:$0xff]
    %v103 = vld [vmem:[#allocation5 + $0xf8] sm:$0xff]
    %vm104 = vcmask 261120
    %v106 = vsel %vm104, %v40, 0
    %v109 = vsel %vm104, %v41, 0
    %v112 = vsel %vm104, %v42, 0
    %v115 = vsel %vm104, %v43, 0
    %v118 = vsel %vm104, %v44, 0
    %v121 = vsel %vm104, %v45, 0
    %v124 = vsel %vm104, %v46, 0
    %v127 = vsel %vm104, %v47, 0
    %v130 = vsel %vm104, %v48, 0
    %v133 = vsel %vm104, %v49, 0
    %v136 = vsel %vm104, %v50, 0
    %v139 = vsel %vm104, %v51, 0
    %v142 = vsel %vm104, %v52, 0
    %v145 = vsel %vm104, %v53, 0
    %v148 = vsel %vm104, %v54, 0
    %v151 = vsel %vm104, %v55, 0
    %v154 = vsel %vm104, %v56, 0
    %v157 = vsel %vm104, %v57, 0
    %v160 = vsel %vm104, %v58, 0
    %v163 = vsel %vm104, %v59, 0
    %v166 = vsel %vm104, %v60, 0
    %v169 = vsel %vm104, %v61, 0
    %v172 = vsel %vm104, %v62, 0
    %v175 = vsel %vm104, %v63, 0
    %v178 = vsel %vm104, %v64, 0
    %v181 = vsel %vm104, %v65, 0
    %v184 = vsel %vm104, %v66, 0
    %v187 = vsel %vm104, %v67, 0
    %v190 = vsel %vm104, %v68, 0
    %v193 = vsel %vm104, %v69, 0
    %v196 = vsel %vm104, %v70, 0
    %v199 = vsel %vm104, %v71, 0
    %v202 = vsel %vm104, %v72, 0
    %v205 = vsel %vm104, %v73, 0
    %v208 = vsel %vm104, %v74, 0
    %v211 = vsel %vm104, %v75, 0
    %v214 = vsel %vm104, %v76, 0
    %v217 = vsel %vm104, %v77, 0
    %v220 = vsel %vm104, %v78, 0
    %v223 = vsel %vm104, %v79, 0
    %v226 = vsel %vm104, %v80, 0
    %v229 = vsel %vm104, %v81, 0
    %v232 = vsel %vm104, %v82, 0
    %v235 = vsel %vm104, %v83, 0
    %v238 = vsel %vm104, %v84, 0
    %v241 = vsel %vm104, %v85, 0
    %v244 = vsel %vm104, %v86, 0
    %v247 = vsel %vm104, %v87, 0
    %v250 = vsel %vm104, %v88, 0
    %v253 = vsel %vm104, %v89, 0
    %v256 = vsel %vm104, %v90, 0
    %v259 = vsel %vm104, %v91, 0
    %v262 = vsel %vm104, %v92, 0
    %v265 = vsel %vm104, %v93, 0
    %v268 = vsel %vm104, %v94, 0
    %v271 = vsel %vm104, %v95, 0
    %v274 = vsel %vm104, %v96, 0
    %v277 = vsel %vm104, %v97, 0
    %v280 = vsel %vm104, %v98, 0
    %v283 = vsel %vm104, %v99, 0
    %v286 = vsel %vm104, %v100, 0
    %v289 = vsel %vm104, %v101, 0
    %v292 = vsel %vm104, %v102, 0
    %v295 = vsel %vm104, %v103, 0
    %297 = vmatprep.subr.mxu0 0.0
    %298 = vmatpush1.xpose.msra.mxu0 %v202
    %299 = vmatprep.subr.mxu0 0.0
    %300 = vmatpush1.xpose.msra.mxu0 %v205
    %301 = vmatprep.subr.mxu0 0.0
    %302 = vmatpush1.xpose.msra.mxu0 %v208
    %303 = vmatprep.subr.mxu0 0.0
    %304 = vmatpush1.xpose.msra.mxu0 %v211
    %305 = vmatprep.subr.mxu0 0.0
    %306 = vmatpush1.xpose.msra.mxu0 %v214
    %307 = vmatprep.subr.mxu0 0.0
    %308 = vmatpush1.xpose.msra.mxu0 %v217
    %309 = vmatprep.subr.mxu0 0.0
    %310 = vmatpush1.xpose.msra.mxu0 %v220
    %311 = vmatprep.subr.mxu0 0.0
    %312 = vmatpush1.xpose.msra.mxu0 %v223
    %313 = vmatprep.subr.mxu0 0.0
    %314 = vmatpush1.xpose.msra.mxu0 %v226
    %315 = vmatprep.subr.mxu0 0.0
    %316 = vmatpush1.xpose.msra.mxu0 %v229
    %317 = vmatprep.subr.mxu0 0.0
    %318 = vmatpush1.xpose.msra.mxu0 %v232
    %319 = vmatprep.subr.mxu0 0.0
    %320 = vmatpush1.xpose.msra.mxu0 %v235
    %321 = vmatprep.subr.mxu0 0.0
    %322 = vmatpush1.xpose.msra.mxu0 %v238
    %323 = vmatprep.subr.mxu0 0.0
    %324 = vmatpush1.xpose.msra.mxu0 %v241
    %325 = vmatprep.subr.mxu0 0.0
    %326 = vmatpush1.xpose.msra.mxu0 %v244
    %327 = vmatprep.subr.mxu0 0.0
    %328 = vmatpush1.xpose.msra.mxu0 %v247
    %329 = vmatprep.subr.mxu0 0.0
    %330 = vmatpush1.xpose.msra.mxu0 %v250
    %331 = vmatprep.subr.mxu0 0.0
    %332 = vmatpush1.xpose.msra.mxu0 %v253
    %333 = vmatprep.subr.mxu0 0.0
    %334 = vmatpush1.xpose.msra.mxu0 %v256
    %335 = vmatprep.subr.mxu0 0.0
    %336 = vmatpush1.xpose.msra.mxu0 %v259
    %337 = vmatprep.subr.mxu0 0.0
    %338 = vmatpush1.xpose.msra.mxu0 %v262
    %339 = vmatprep.subr.mxu0 0.0
    %340 = vmatpush1.xpose.msra.mxu0 %v265
    %341 = vmatprep.subr.mxu0 0.0
    %342 = vmatpush1.xpose.msra.mxu0 %v268
    %343 = vmatprep.subr.mxu0 0.0
    %344 = vmatpush1.xpose.msra.mxu0 %v271
    %345 = vmatprep.subr.mxu0 0.0
    %346 = vmatpush1.xpose.msra.mxu0 %v274
    %347 = vmatprep.subr.mxu0 0.0
    %348 = vmatpush1.xpose.msra.mxu0 %v277
    %349 = vmatprep.subr.mxu0 0.0
    %350 = vmatpush1.xpose.msra.mxu0 %v280
    %351 = vmatprep.subr.mxu0 0.0
    %352 = vmatpush1.xpose.msra.mxu0 %v283
    %353 = vmatprep.subr.mxu0 0.0
    %354 = vmatpush1.xpose.msra.mxu0 %v286
    %355 = vmatprep.subr.mxu0 0.0
    %356 = vmatpush1.xpose.msra.mxu0 %v289
    %357 = vmatprep.subr.mxu0 0.0
    %358 = vmatpush1.xpose.msra.mxu0 %v292
    %359 = vmatprep.subr.mxu0 0.0
    %360 = vmatpush1.xpose.msra.mxu0 %v295
    %361 = vmatprep.mubr.f32.mxu0 0.0
    %362 = vmatmul.mubr.f32.gmra.mrb[0].mxu0 %v106
    %v363 = vpop.f32.mrb[0].mxu0
    %v364 = vadd.f32 0.0, %v363
    %v365 = vpop.f32.mrb[0].mxu0
    %v366 = vadd.f32 0.0, %v365
    %367 = vmatprep.mubr.f32.mxu0 0.0
    %368 = vmatmul.mubr.f32.gmra.mrb[0].mxu0 %v109
    %v369 = vpop.f32.mrb[0].mxu0
    %v370 = vadd.f32 0.0, %v369
    %v371 = vpop.f32.mrb[0].mxu0
    %v372 = vadd.f32 0.0, %v371
    %373 = vmatprep.mubr.f32.mxu0 0.0
    %374 = vmatmul.mubr.f32.gmra.mrb[0].mxu0 %v112
    %v375 = vpop.f32.mrb[0].mxu0
    %v376 = vadd.f32 0.0, %v375
    %v377 = vpop.f32.mrb[0].mxu0
    %v378 = vadd.f32 0.0, %v377
    %379 = vmatprep.mubr.f32.mxu0 0.0
    %380 = vmatmul.mubr.f32.gmra.mrb[0].mxu0 %v115
    %v381 = vpop.f32.mrb[0].mxu0
    %v382 = vadd.f32 0.0, %v381
    %v383 = vpop.f32.mrb[0].mxu0
    %v384 = vadd.f32 0.0, %v383
    %385 = vmatprep.mubr.f32.mxu0 0.0
    %386 = vmatmul.mubr.f32.gmra.mrb[0].mxu0 %v118
    %v387 = vpop.f32.mrb[0].mxu0
    %v388 = vadd.f32 0.0, %v387
    %v389 = vpop.f32.mrb[0].mxu0
    %v390 = vadd.f32 0.0, %v389
    %391 = vmatprep.mubr.f32.mxu0 0.0
    %392 = vmatmul.mubr.f32.gmra.mrb[0].mxu0 %v121
    %v393 = vpop.f32.mrb[0].mxu0
    %v394 = vadd.f32 0.0, %v393
    %v395 = vpop.f32.mrb[0].mxu0
    %v396 = vadd.f32 0.0, %v395
    %397 = vmatprep.mubr.f32.mxu0 0.0
    %398 = vmatmul.mubr.f32.gmra.mrb[0].mxu0 %v124
    %v399 = vpop.f32.mrb[0].mxu0
    %v400 = vadd.f32 0.0, %v399
    %v401 = vpop.f32.mrb[0].mxu0
    %v402 = vadd.f32 0.0, %v401
    %403 = vmatprep.mubr.f32.mxu0 0.0
    %404 = vmatmul.mubr.f32.gmra.mrb[0].mxu0 %v127
    %v405 = vpop.f32.mrb[0].mxu0
    %v406 = vadd.f32 0.0, %v405
    %v407 = vpop.f32.mrb[0].mxu0
    %v408 = vadd.f32 0.0, %v407
    %409 = vmatprep.mubr.f32.mxu0 0.0
    %410 = vmatmul.mubr.f32.gmra.mrb[0].mxu0 %v130
    %v411 = vpop.f32.mrb[0].mxu0
    %v412 = vadd.f32 0.0, %v411
    %v413 = vpop.f32.mrb[0].mxu0
    %v414 = vadd.f32 0.0, %v413
    %415 = vmatprep.mubr.f32.mxu0 0.0
    %416 = vmatmul.mubr.f32.gmra.mrb[0].mxu0 %v133
    %v417 = vpop.f32.mrb[0].mxu0
    %v418 = vadd.f32 0.0, %v417
    %v419 = vpop.f32.mrb[0].mxu0
    %v420 = vadd.f32 0.0, %v419
    %421 = vmatprep.mubr.f32.mxu0 0.0
    %422 = vmatmul.mubr.f32.gmra.mrb[0].mxu0 %v136
    %v423 = vpop.f32.mrb[0].mxu0
    %v424 = vadd.f32 0.0, %v423
    %v425 = vpop.f32.mrb[0].mxu0
    %v426 = vadd.f32 0.0, %v425
    %427 = vmatprep.mubr.f32.mxu0 0.0
    %428 = vmatmul.mubr.f32.gmra.mrb[0].mxu0 %v139
    %v429 = vpop.f32.mrb[0].mxu0
    %v430 = vadd.f32 0.0, %v429
    %v431 = vpop.f32.mrb[0].mxu0
    %v432 = vadd.f32 0.0, %v431
    %433 = vmatprep.mubr.f32.mxu0 0.0
    %434 = vmatmul.mubr.f32.gmra.mrb[0].mxu0 %v142
    %v435 = vpop.f32.mrb[0].mxu0
    %v436 = vadd.f32 0.0, %v435
    %v437 = vpop.f32.mrb[0].mxu0
    %v438 = vadd.f32 0.0, %v437
    %439 = vmatprep.mubr.f32.mxu0 0.0
    %440 = vmatmul.mubr.f32.gmra.mrb[0].mxu0 %v145
    %v441 = vpop.f32.mrb[0].mxu0
    %v442 = vadd.f32 0.0, %v441
    %v443 = vpop.f32.mrb[0].mxu0
    %v444 = vadd.f32 0.0, %v443
    %445 = vmatprep.mubr.f32.mxu0 0.0
    %446 = vmatmul.mubr.f32.gmra.mrb[0].mxu0 %v148
    %v447 = vpop.f32.mrb[0].mxu0
    %v448 = vadd.f32 0.0, %v447
    %v449 = vpop.f32.mrb[0].mxu0
    %v450 = vadd.f32 0.0, %v449
    %451 = vmatprep.mubr.f32.mxu0 0.0
    %452 = vmatmul.mubr.f32.gmra.mrb[0].mxu0 %v151
    %v453 = vpop.f32.mrb[0].mxu0
    %v454 = vadd.f32 0.0, %v453
    %v455 = vpop.f32.mrb[0].mxu0
    %v456 = vadd.f32 0.0, %v455
    %457 = vmatprep.mubr.f32.mxu0 0.0
    %458 = vmatmul.mubr.f32.gmra.mrb[0].mxu0 %v154
    %v459 = vpop.f32.mrb[0].mxu0
    %v460 = vadd.f32 0.0, %v459
    %v461 = vpop.f32.mrb[0].mxu0
    %v462 = vadd.f32 0.0, %v461
    %463 = vmatprep.mubr.f32.mxu0 0.0
    %464 = vmatmul.mubr.f32.gmra.mrb[0].mxu0 %v157
    %v465 = vpop.f32.mrb[0].mxu0
    %v466 = vadd.f32 0.0, %v465
    %v467 = vpop.f32.mrb[0].mxu0
    %v468 = vadd.f32 0.0, %v467
    %469 = vmatprep.mubr.f32.mxu0 0.0
    %470 = vmatmul.mubr.f32.gmra.mrb[0].mxu0 %v160
    %v471 = vpop.f32.mrb[0].mxu0
    %v472 = vadd.f32 0.0, %v471
    %v473 = vpop.f32.mrb[0].mxu0
    %v474 = vadd.f32 0.0, %v473
    %475 = vmatprep.mubr.f32.mxu0 0.0
    %476 = vmatmul.mubr.f32.gmra.mrb[0].mxu0 %v163
    %v477 = vpop.f32.mrb[0].mxu0
    %v478 = vadd.f32 0.0, %v477
    %v479 = vpop.f32.mrb[0].mxu0
    %v480 = vadd.f32 0.0, %v479
    %481 = vmatprep.mubr.f32.mxu0 0.0
    %482 = vmatmul.mubr.f32.gmra.mrb[0].mxu0 %v166
    %v483 = vpop.f32.mrb[0].mxu0
    %v484 = vadd.f32 0.0, %v483
    %v485 = vpop.f32.mrb[0].mxu0
    %v486 = vadd.f32 0.0, %v485
    %487 = vmatprep.mubr.f32.mxu0 0.0
    %488 = vmatmul.mubr.f32.gmra.mrb[0].mxu0 %v169
    %v489 = vpop.f32.mrb[0].mxu0
    %v490 = vadd.f32 0.0, %v489
    %v491 = vpop.f32.mrb[0].mxu0
    %v492 = vadd.f32 0.0, %v491
    %493 = vmatprep.mubr.f32.mxu0 0.0
    %494 = vmatmul.mubr.f32.gmra.mrb[0].mxu0 %v172
    %v495 = vpop.f32.mrb[0].mxu0
    %v496 = vadd.f32 0.0, %v495
    %v497 = vpop.f32.mrb[0].mxu0
    %v498 = vadd.f32 0.0, %v497
    %499 = vmatprep.mubr.f32.mxu0 0.0
    %500 = vmatmul.mubr.f32.gmra.mrb[0].mxu0 %v175
    %v501 = vpop.f32.mrb[0].mxu0
    %v502 = vadd.f32 0.0, %v501
    %v503 = vpop.f32.mrb[0].mxu0
    %v504 = vadd.f32 0.0, %v503
    %505 = vmatprep.mubr.f32.mxu0 0.0
    %506 = vmatmul.mubr.f32.gmra.mrb[0].mxu0 %v178
    %v507 = vpop.f32.mrb[0].mxu0
    %v508 = vadd.f32 0.0, %v507
    %v509 = vpop.f32.mrb[0].mxu0
    %v510 = vadd.f32 0.0, %v509
    %511 = vmatprep.mubr.f32.mxu0 0.0
    %512 = vmatmul.mubr.f32.gmra.mrb[0].mxu0 %v181
    %v513 = vpop.f32.mrb[0].mxu0
    %v514 = vadd.f32 0.0, %v513
    %v515 = vpop.f32.mrb[0].mxu0
    %v516 = vadd.f32 0.0, %v515
    %517 = vmatprep.mubr.f32.mxu0 0.0
    %518 = vmatmul.mubr.f32.gmra.mrb[0].mxu0 %v184
    %v519 = vpop.f32.mrb[0].mxu0
    %v520 = vadd.f32 0.0, %v519
    %v521 = vpop.f32.mrb[0].mxu0
    %v522 = vadd.f32 0.0, %v521
    %523 = vmatprep.mubr.f32.mxu0 0.0
    %524 = vmatmul.mubr.f32.gmra.mrb[0].mxu0 %v187
    %v525 = vpop.f32.mrb[0].mxu0
    %v526 = vadd.f32 0.0, %v525
    %v527 = vpop.f32.mrb[0].mxu0
    %v528 = vadd.f32 0.0, %v527
    %529 = vmatprep.mubr.f32.mxu0 0.0
    %530 = vmatmul.mubr.f32.gmra.mrb[0].mxu0 %v190
    %v531 = vpop.f32.mrb[0].mxu0
    %v532 = vadd.f32 0.0, %v531
    %v533 = vpop.f32.mrb[0].mxu0
    %v534 = vadd.f32 0.0, %v533
    %535 = vmatprep.mubr.f32.mxu0 0.0
    %536 = vmatmul.mubr.f32.gmra.mrb[0].mxu0 %v193
    %v537 = vpop.f32.mrb[0].mxu0
    %v538 = vadd.f32 0.0, %v537
    %v539 = vpop.f32.mrb[0].mxu0
    %v540 = vadd.f32 0.0, %v539
    %541 = vmatprep.mubr.f32.mxu0 0.0
    %542 = vmatmul.mubr.f32.gmra.mrb[0].mxu0 %v196
    %v543 = vpop.f32.mrb[0].mxu0
    %v544 = vadd.f32 0.0, %v543
    %v545 = vpop.f32.mrb[0].mxu0
    %v546 = vadd.f32 0.0, %v545
    %547 = vmatprep.mubr.f32.mxu0 0.0
    %548 = vmatmul.mubr.f32.gmra.mrb[0].mxu0 %v199
    %v549 = vpop.f32.mrb[0].mxu0
    %v550 = vadd.f32 0.0, %v549
    %v551 = vpop.f32.mrb[0].mxu0
    %v552 = vadd.f32 0.0, %v551
    %553 = vdwg.mxu0
    %v554 = vxor.u32 %v364, 2147483648
    %v555 = vxor.u32 %v366, 2147483648
    %v556 = vxor.u32 %v370, 2147483648
    %v557 = vxor.u32 %v372, 2147483648
    %v558 = vxor.u32 %v376, 2147483648
    %v559 = vxor.u32 %v378, 2147483648
    %v560 = vxor.u32 %v382, 2147483648
    %v561 = vxor.u32 %v384, 2147483648
    %v562 = vxor.u32 %v388, 2147483648
    %v563 = vxor.u32 %v390, 2147483648
    %v564 = vxor.u32 %v394, 2147483648
    %v565 = vxor.u32 %v396, 2147483648
    %v566 = vxor.u32 %v400, 2147483648
    %v567 = vxor.u32 %v402, 2147483648
    %v568 = vxor.u32 %v406, 2147483648
    %v569 = vxor.u32 %v408, 2147483648
    %v570 = vxor.u32 %v412, 2147483648
    %v571 = vxor.u32 %v414, 2147483648
    %v572 = vxor.u32 %v418, 2147483648
    %v573 = vxor.u32 %v420, 2147483648
    %v574 = vxor.u32 %v424, 2147483648
    %v575 = vxor.u32 %v426, 2147483648
    %v576 = vxor.u32 %v430, 2147483648
    %v577 = vxor.u32 %v432, 2147483648
    %v578 = vxor.u32 %v436, 2147483648
    %v579 = vxor.u32 %v438, 2147483648
    %v580 = vxor.u32 %v442, 2147483648
    %v581 = vxor.u32 %v444, 2147483648
    %v582 = vxor.u32 %v448, 2147483648
    %v583 = vxor.u32 %v450, 2147483648
    %v584 = vxor.u32 %v454, 2147483648
    %v585 = vxor.u32 %v456, 2147483648
    %v586 = vxor.u32 %v460, 2147483648
    %v587 = vxor.u32 %v462, 2147483648
    %v588 = vxor.u32 %v466, 2147483648
    %v589 = vxor.u32 %v468, 2147483648
    %v590 = vxor.u32 %v472, 2147483648
    %v591 = vxor.u32 %v474, 2147483648
    %v592 = vxor.u32 %v478, 2147483648
    %v593 = vxor.u32 %v480, 2147483648
    %v594 = vxor.u32 %v484, 2147483648
    %v595 = vxor.u32 %v486, 2147483648
    %v596 = vxor.u32 %v490, 2147483648
    %v597 = vxor.u32 %v492, 2147483648
    %v598 = vxor.u32 %v496, 2147483648
    %v599 = vxor.u32 %v498, 2147483648
    %v600 = vxor.u32 %v502, 2147483648
    %v601 = vxor.u32 %v504, 2147483648
    %v602 = vxor.u32 %v508, 2147483648
    %v603 = vxor.u32 %v510, 2147483648
    %v604 = vxor.u32 %v514, 2147483648
    %v605 = vxor.u32 %v516, 2147483648
    %v606 = vxor.u32 %v520, 2147483648
    %v607 = vxor.u32 %v522, 2147483648
    %v608 = vxor.u32 %v526, 2147483648
    %v609 = vxor.u32 %v528, 2147483648
    %v610 = vxor.u32 %v532, 2147483648
    %v611 = vxor.u32 %v534, 2147483648
    %v612 = vxor.u32 %v538, 2147483648
    %v613 = vxor.u32 %v540, 2147483648
    %v614 = vxor.u32 %v544, 2147483648
    %v615 = vxor.u32 %v546, 2147483648
    %v616 = vxor.u32 %v550, 2147483648
    %v617 = vxor.u32 %v552, 2147483648
    %v618 = vmul.f32 %v554, 1.442695
    %v619 = vpow.pop %v618
    %v620 = vmul.f32 %v555, 1.442695
    %v621 = vpow.pop %v620
    %v622 = vmul.f32 %v556, 1.442695
    %v623 = vpow.pop %v622
    %v624 = vmul.f32 %v557, 1.442695
    %v625 = vpow.pop %v624
    %v626 = vmul.f32 %v558, 1.442695
    %v627 = vpow.pop %v626
    %v628 = vmul.f32 %v559, 1.442695
    %v629 = vpow.pop %v628
    %v630 = vmul.f32 %v560, 1.442695
    %v631 = vpow.pop %v630
    %v632 = vmul.f32 %v561, 1.442695
    %v633 = vpow.pop %v632
    %v634 = vmul.f32 %v562, 1.442695
    %v635 = vpow.pop %v634
    %v636 = vmul.f32 %v563, 1.442695
    %v637 = vpow.pop %v636
    %v638 = vmul.f32 %v564, 1.442695
    %v639 = vpow.pop %v638
    %v640 = vmul.f32 %v565, 1.442695
    %v641 = vpow.pop %v640
    %v642 = vmul.f32 %v566, 1.442695
    %v643 = vpow.pop %v642
    %v644 = vmul.f32 %v567, 1.442695
    %v645 = vpow.pop %v644
    %v646 = vmul.f32 %v568, 1.442695
    %v647 = vpow.pop %v646
    %v648 = vmul.f32 %v569, 1.442695
    %v649 = vpow.pop %v648
    %v650 = vmul.f32 %v570, 1.442695
    %v651 = vpow.pop %v650
    %v652 = vmul.f32 %v571, 1.442695
    %v653 = vpow.pop %v652
    %v654 = vmul.f32 %v572, 1.442695
    %v655 = vpow.pop %v654
    %v656 = vmul.f32 %v573, 1.442695
    %v657 = vpow.pop %v656
    %v658 = vmul.f32 %v574, 1.442695
    %v659 = vpow.pop %v658
    %v660 = vmul.f32 %v575, 1.442695
    %v661 = vpow.pop %v660
    %v662 = vmul.f32 %v576, 1.442695
    %v663 = vpow.pop %v662
    %v664 = vmul.f32 %v577, 1.442695
    %v665 = vpow.pop %v664
    %v666 = vmul.f32 %v578, 1.442695
    %v667 = vpow.pop %v666
    %v668 = vmul.f32 %v579, 1.442695
    %v669 = vpow.pop %v668
    %v670 = vmul.f32 %v580, 1.442695
    %v671 = vpow.pop %v670
    %v672 = vmul.f32 %v581, 1.442695
    %v673 = vpow.pop %v672
    %v674 = vmul.f32 %v582, 1.442695
    %v675 = vpow.pop %v674
    %v676 = vmul.f32 %v583, 1.442695
    %v677 = vpow.pop %v676
    %v678 = vmul.f32 %v584, 1.442695
    %v679 = vpow.pop %v678
    %v680 = vmul.f32 %v585, 1.442695
    %v681 = vpow.pop %v680
    %v682 = vmul.f32 %v586, 1.442695
    %v683 = vpow.pop %v682
    %v684 = vmul.f32 %v587, 1.442695
    %v685 = vpow.pop %v684
    %v686 = vmul.f32 %v588, 1.442695
    %v687 = vpow.pop %v686
    %v688 = vmul.f32 %v589, 1.442695
    %v689 = vpow.pop %v688
    %v690 = vmul.f32 %v590, 1.442695
    %v691 = vpow.pop %v690
    %v692 = vmul.f32 %v591, 1.442695
    %v693 = vpow.pop %v692
    %v694 = vmul.f32 %v592, 1.442695
    %v695 = vpow.pop %v694
    %v696 = vmul.f32 %v593, 1.442695
    %v697 = vpow.pop %v696
    %v698 = vmul.f32 %v594, 1.442695
    %v699 = vpow.pop %v698
    %v700 = vmul.f32 %v595, 1.442695
    %v701 = vpow.pop %v700
    %v702 = vmul.f32 %v596, 1.442695
    %v703 = vpow.pop %v702
    %v704 = vmul.f32 %v597, 1.442695
    %v705 = vpow.pop %v704
    %v706 = vmul.f32 %v598, 1.442695
    %v707 = vpow.pop %v706
    %v708 = vmul.f32 %v599, 1.442695
    %v709 = vpow.pop %v708
    %v710 = vmul.f32 %v600, 1.442695
    %v711 = vpow.pop %v710
    %v712 = vmul.f32 %v601, 1.442695
    %v713 = vpow.pop %v712
    %v714 = vmul.f32 %v602, 1.442695
    %v715 = vpow.pop %v714
    %v716 = vmul.f32 %v603, 1.442695
    %v717 = vpow.pop %v716
    %v718 = vmul.f32 %v604, 1.442695
    %v719 = vpow.pop %v718
    %v720 = vmul.f32 %v605, 1.442695
    %v721 = vpow.pop %v720
    %v722 = vmul.f32 %v606, 1.442695
    %v723 = vpow.pop %v722
    %v724 = vmul.f32 %v607, 1.442695
    %v725 = vpow.pop %v724
    %v726 = vmul.f32 %v608, 1.442695
    %v727 = vpow.pop %v726
    %v728 = vmul.f32 %v609, 1.442695
    %v729 = vpow.pop %v728
    %v730 = vmul.f32 %v610, 1.442695
    %v731 = vpow.pop %v730
    %v732 = vmul.f32 %v611, 1.442695
    %v733 = vpow.pop %v732
    %v734 = vmul.f32 %v612, 1.442695
    %v735 = vpow.pop %v734
    %v736 = vmul.f32 %v613, 1.442695
    %v737 = vpow.pop %v736
    %v738 = vmul.f32 %v614, 1.442695
    %v739 = vpow.pop %v738
    %v740 = vmul.f32 %v615, 1.442695
    %v741 = vpow.pop %v740
    %v742 = vmul.f32 %v616, 1.442695
    %v743 = vpow.pop %v742
    %v744 = vmul.f32 %v617, 1.442695
    %v745 = vpow.pop %v744
    %v746 = vadd.f32 %v619, 1.0
    %v747 = vadd.f32 %v621, 1.0
    %v748 = vadd.f32 %v623, 1.0
    %v749 = vadd.f32 %v625, 1.0
    %v750 = vadd.f32 %v627, 1.0
    %v751 = vadd.f32 %v629, 1.0
    %v752 = vadd.f32 %v631, 1.0
    %v753 = vadd.f32 %v633, 1.0
    %v754 = vadd.f32 %v635, 1.0
    %v755 = vadd.f32 %v637, 1.0
    %v756 = vadd.f32 %v639, 1.0
    %v757 = vadd.f32 %v641, 1.0
    %v758 = vadd.f32 %v643, 1.0
    %v759 = vadd.f32 %v645, 1.0
    %v760 = vadd.f32 %v647, 1.0
    %v761 = vadd.f32 %v649, 1.0
    %v762 = vadd.f32 %v651, 1.0
    %v763 = vadd.f32 %v653, 1.0
    %v764 = vadd.f32 %v655, 1.0
    %v765 = vadd.f32 %v657, 1.0
    %v766 = vadd.f32 %v659, 1.0
    %v767 = vadd.f32 %v661, 1.0
    %v768 = vadd.f32 %v663, 1.0
    %v769 = vadd.f32 %v665, 1.0
    %v770 = vadd.f32 %v667, 1.0
    %v771 = vadd.f32 %v669, 1.0
    %v772 = vadd.f32 %v671, 1.0
    %v773 = vadd.f32 %v673, 1.0
    %v774 = vadd.f32 %v675, 1.0
    %v775 = vadd.f32 %v677, 1.0
    %v776 = vadd.f32 %v679, 1.0
    %v777 = vadd.f32 %v681, 1.0
    %v778 = vadd.f32 %v683, 1.0
    %v779 = vadd.f32 %v685, 1.0
    %v780 = vadd.f32 %v687, 1.0
    %v781 = vadd.f32 %v689, 1.0
    %v782 = vadd.f32 %v691, 1.0
    %v783 = vadd.f32 %v693, 1.0
    %v784 = vadd.f32 %v695, 1.0
    %v785 = vadd.f32 %v697, 1.0
    %v786 = vadd.f32 %v699, 1.0
    %v787 = vadd.f32 %v701, 1.0
    %v788 = vadd.f32 %v703, 1.0
    %v789 = vadd.f32 %v705, 1.0
    %v790 = vadd.f32 %v707, 1.0
    %v791 = vadd.f32 %v709, 1.0
    %v792 = vadd.f32 %v711, 1.0
    %v793 = vadd.f32 %v713, 1.0
    %v794 = vadd.f32 %v715, 1.0
    %v795 = vadd.f32 %v717, 1.0
    %v796 = vadd.f32 %v719, 1.0
    %v797 = vadd.f32 %v721, 1.0
    %v798 = vadd.f32 %v723, 1.0
    %v799 = vadd.f32 %v725, 1.0
    %v800 = vadd.f32 %v727, 1.0
    %v801 = vadd.f32 %v729, 1.0
    %v802 = vadd.f32 %v731, 1.0
    %v803 = vadd.f32 %v733, 1.0
    %v804 = vadd.f32 %v735, 1.0
    %v805 = vadd.f32 %v737, 1.0
    %v806 = vadd.f32 %v739, 1.0
    %v807 = vadd.f32 %v741, 1.0
    %v808 = vadd.f32 %v743, 1.0
    %v809 = vadd.f32 %v745, 1.0
    %v810 = vrcp.pop %v746
    %v811 = vmul.f32 1.0, %v810
    %v812 = vrcp.pop %v747
    %v813 = vmul.f32 1.0, %v812
    %v814 = vrcp.pop %v748
    %v815 = vmul.f32 1.0, %v814
    %v816 = vrcp.pop %v749
    %v817 = vmul.f32 1.0, %v816
    %v818 = vrcp.pop %v750
    %v819 = vmul.f32 1.0, %v818
    %v820 = vrcp.pop %v751
    %v821 = vmul.f32 1.0, %v820
    %v822 = vrcp.pop %v752
    %v823 = vmul.f32 1.0, %v822
    %v824 = vrcp.pop %v753
    %v825 = vmul.f32 1.0, %v824
    %v826 = vrcp.pop %v754
    %v827 = vmul.f32 1.0, %v826
    %v828 = vrcp.pop %v755
    %v829 = vmul.f32 1.0, %v828
    %v830 = vrcp.pop %v756
    %v831 = vmul.f32 1.0, %v830
    %v832 = vrcp.pop %v757
    %v833 = vmul.f32 1.0, %v832
    %v834 = vrcp.pop %v758
    %v835 = vmul.f32 1.0, %v834
    %v836 = vrcp.pop %v759
    %v837 = vmul.f32 1.0, %v836
    %v838 = vrcp.pop %v760
    %v839 = vmul.f32 1.0, %v838
    %v840 = vrcp.pop %v761
    %v841 = vmul.f32 1.0, %v840
    %v842 = vrcp.pop %v762
    %v843 = vmul.f32 1.0, %v842
    %v844 = vrcp.pop %v763
    %v845 = vmul.f32 1.0, %v844
    %v846 = vrcp.pop %v764
    %v847 = vmul.f32 1.0, %v846
    %v848 = vrcp.pop %v765
    %v849 = vmul.f32 1.0, %v848
    %v850 = vrcp.pop %v766
    %v851 = vmul.f32 1.0, %v850
    %v852 = vrcp.pop %v767
    %v853 = vmul.f32 1.0, %v852
    %v854 = vrcp.pop %v768
    %v855 = vmul.f32 1.0, %v854
    %v856 = vrcp.pop %v769
    %v857 = vmul.f32 1.0, %v856
    %v858 = vrcp.pop %v770
    %v859 = vmul.f32 1.0, %v858
    %v860 = vrcp.pop %v771
    %v861 = vmul.f32 1.0, %v860
    %v862 = vrcp.pop %v772
    %v863 = vmul.f32 1.0, %v862
    %v864 = vrcp.pop %v773
    %v865 = vmul.f32 1.0, %v864
    %v866 = vrcp.pop %v774
    %v867 = vmul.f32 1.0, %v866
    %v868 = vrcp.pop %v775
    %v869 = vmul.f32 1.0, %v868
    %v870 = vrcp.pop %v776
    %v871 = vmul.f32 1.0, %v870
    %v872 = vrcp.pop %v777
    %v873 = vmul.f32 1.0, %v872
    %v874 = vrcp.pop %v778
    %v875 = vmul.f32 1.0, %v874
    %v876 = vrcp.pop %v779
    %v877 = vmul.f32 1.0, %v876
    %v878 = vrcp.pop %v780
    %v879 = vmul.f32 1.0, %v878
    %v880 = vrcp.pop %v781
    %v881 = vmul.f32 1.0, %v880
    %v882 = vrcp.pop %v782
    %v883 = vmul.f32 1.0, %v882
    %v884 = vrcp.pop %v783
    %v885 = vmul.f32 1.0, %v884
    %v886 = vrcp.pop %v784
    %v887 = vmul.f32 1.0, %v886
    %v888 = vrcp.pop %v785
    %v889 = vmul.f32 1.0, %v888
    %v890 = vrcp.pop %v786
    %v891 = vmul.f32 1.0, %v890
    %v892 = vrcp.pop %v787
    %v893 = vmul.f32 1.0, %v892
    %v894 = vrcp.pop %v788
    %v895 = vmul.f32 1.0, %v894
    %v896 = vrcp.pop %v789
    %v897 = vmul.f32 1.0, %v896
    %v898 = vrcp.pop %v790
    %v899 = vmul.f32 1.0, %v898
    %v900 = vrcp.pop %v791
    %v901 = vmul.f32 1.0, %v900
    %v902 = vrcp.pop %v792
    %v903 = vmul.f32 1.0, %v902
    %v904 = vrcp.pop %v793
    %v905 = vmul.f32 1.0, %v904
    %v906 = vrcp.pop %v794
    %v907 = vmul.f32 1.0, %v906
    %v908 = vrcp.pop %v795
    %v909 = vmul.f32 1.0, %v908
    %v910 = vrcp.pop %v796
    %v911 = vmul.f32 1.0, %v910
    %v912 = vrcp.pop %v797
    %v913 = vmul.f32 1.0, %v912
    %v914 = vrcp.pop %v798
    %v915 = vmul.f32 1.0, %v914
    %v916 = vrcp.pop %v799
    %v917 = vmul.f32 1.0, %v916
    %v918 = vrcp.pop %v800
    %v919 = vmul.f32 1.0, %v918
    %v920 = vrcp.pop %v801
    %v921 = vmul.f32 1.0, %v920
    %v922 = vrcp.pop %v802
    %v923 = vmul.f32 1.0, %v922
    %v924 = vrcp.pop %v803
    %v925 = vmul.f32 1.0, %v924
    %v926 = vrcp.pop %v804
    %v927 = vmul.f32 1.0, %v926
    %v928 = vrcp.pop %v805
    %v929 = vmul.f32 1.0, %v928
    %v930 = vrcp.pop %v806
    %v931 = vmul.f32 1.0, %v930
    %v932 = vrcp.pop %v807
    %v933 = vmul.f32 1.0, %v932
    %v934 = vrcp.pop %v808
    %v935 = vmul.f32 1.0, %v934
    %v936 = vrcp.pop %v809
    %v937 = vmul.f32 1.0, %v936
    %938 = vst [vmem:[#allocation7] sm:$0xff] %v811
    %939 = vst [vmem:[#allocation7 + $0x8] sm:$0xff] %v813
    %940 = vst [vmem:[#allocation7 + $0x10] sm:$0xff] %v815
    %941 = vst [vmem:[#allocation7 + $0x18] sm:$0xff] %v817
    %942 = vst [vmem:[#allocation7 + $0x20] sm:$0xff] %v819
    %943 = vst [vmem:[#allocation7 + $0x28] sm:$0xff] %v821
    %944 = vst [vmem:[#allocation7 + $0x30] sm:$0xff] %v823
    %945 = vst [vmem:[#allocation7 + $0x38] sm:$0xff] %v825
    %946 = vst [vmem:[#allocation7 + $0x40] sm:$0xff] %v827
    %947 = vst [vmem:[#allocation7 + $0x48] sm:$0xff] %v829
    %948 = vst [vmem:[#allocation7 + $0x50] sm:$0xff] %v831
    %949 = vst [vmem:[#allocation7 + $0x58] sm:$0xff] %v833
    %950 = vst [vmem:[#allocation7 + $0x60] sm:$0xff] %v835
    %951 = vst [vmem:[#allocation7 + $0x68] sm:$0xff] %v837
    %952 = vst [vmem:[#allocation7 + $0x70] sm:$0xff] %v839
    %953 = vst [vmem:[#allocation7 + $0x78] sm:$0xff] %v841
    %954 = vst [vmem:[#allocation7 + $0x80] sm:$0xff] %v843
    %955 = vst [vmem:[#allocation7 + $0x88] sm:$0xff] %v845
    %956 = vst [vmem:[#allocation7 + $0x90] sm:$0xff] %v847
    %957 = vst [vmem:[#allocation7 + $0x98] sm:$0xff] %v849
    %958 = vst [vmem:[#allocation7 + $0xa0] sm:$0xff] %v851
    %959 = vst [vmem:[#allocation7 + $0xa8] sm:$0xff] %v853
    %960 = vst [vmem:[#allocation7 + $0xb0] sm:$0xff] %v855
    %961 = vst [vmem:[#allocation7 + $0xb8] sm:$0xff] %v857
    %962 = vst [vmem:[#allocation7 + $0xc0] sm:$0xff] %v859
    %963 = vst [vmem:[#allocation7 + $0xc8] sm:$0xff] %v861
    %964 = vst [vmem:[#allocation7 + $0xd0] sm:$0xff] %v863
    %965 = vst [vmem:[#allocation7 + $0xd8] sm:$0xff] %v865
    %966 = vst [vmem:[#allocation7 + $0xe0] sm:$0xff] %v867
    %967 = vst [vmem:[#allocation7 + $0xe8] sm:$0xff] %v869
    %968 = vst [vmem:[#allocation7 + $0xf0] sm:$0xff] %v871
    %969 = vst [vmem:[#allocation7 + $0xf8] sm:$0xff] %v873
    %970 = vst [vmem:[#allocation7 + $0x100] sm:$0xff] %v875
    %971 = vst [vmem:[#allocation7 + $0x108] sm:$0xff] %v877
    %972 = vst [vmem:[#allocation7 + $0x110] sm:$0xff] %v879
    %973 = vst [vmem:[#allocation7 + $0x118] sm:$0xff] %v881
    %974 = vst [vmem:[#allocation7 + $0x120] sm:$0xff] %v883
    %975 = vst [vmem:[#allocation7 + $0x128] sm:$0xff] %v885
    %976 = vst [vmem:[#allocation7 + $0x130] sm:$0xff] %v887
    %977 = vst [vmem:[#allocation7 + $0x138] sm:$0xff] %v889
    %978 = vst [vmem:[#allocation7 + $0x140] sm:$0xff] %v891
    %979 = vst [vmem:[#allocation7 + $0x148] sm:$0xff] %v893
    %980 = vst [vmem:[#allocation7 + $0x150] sm:$0xff] %v895
    %981 = vst [vmem:[#allocation7 + $0x158] sm:$0xff] %v897
    %982 = vst [vmem:[#allocation7 + $0x160] sm:$0xff] %v899
    %983 = vst [vmem:[#allocation7 + $0x168] sm:$0xff] %v901
    %984 = vst [vmem:[#allocation7 + $0x170] sm:$0xff] %v903
    %985 = vst [vmem:[#allocation7 + $0x178] sm:$0xff] %v905
    %986 = vst [vmem:[#allocation7 + $0x180] sm:$0xff] %v907
    %987 = vst [vmem:[#allocation7 + $0x188] sm:$0xff] %v909
    %988 = vst [vmem:[#allocation7 + $0x190] sm:$0xff] %v911
    %989 = vst [vmem:[#allocation7 + $0x198] sm:$0xff] %v913
    %990 = vst [vmem:[#allocation7 + $0x1a0] sm:$0xff] %v915
    %991 = vst [vmem:[#allocation7 + $0x1a8] sm:$0xff] %v917
    %992 = vst [vmem:[#allocation7 + $0x1b0] sm:$0xff] %v919
    %993 = vst [vmem:[#allocation7 + $0x1b8] sm:$0xff] %v921
    %994 = vst [vmem:[#allocation7 + $0x1c0] sm:$0xff] %v923
    %995 = vst [vmem:[#allocation7 + $0x1c8] sm:$0xff] %v925
    %996 = vst [vmem:[#allocation7 + $0x1d0] sm:$0xff] %v927
    %997 = vst [vmem:[#allocation7 + $0x1d8] sm:$0xff] %v929
    %998 = vst [vmem:[#allocation7 + $0x1e0] sm:$0xff] %v931
    %999 = vst [vmem:[#allocation7 + $0x1e8] sm:$0xff] %v933
    %1000 = vst [vmem:[#allocation7 + $0x1f0] sm:$0xff] %v935
    %1001 = vst [vmem:[#allocation7 + $0x1f8] sm:$0xff] %v937
    // Predicated region
    $region18: #{_decode_padded.1} parent=1 // pred_check
      _
    $region19: #{_decode_padded.1} parent=1 // pred_check_branch
      %1003 = sbr.rel (0) target = $region21
    $region20: #{_decode_padded.1} parent=1 // pred_region
      %s1005 = ssub.s32 8192, 8192
      %1006 = vsyncadd [#allocation4], %s1005
      %s1007 = sshll.u32 [#allocation7], 4
      %s1008 = int_to_ptr.vmem [resolvable:$true] %s1007
      %1013 = dma.vmem_to_hbm [thread:$0]  %s1008, 8192, %s2, [#allocation4], 256, 256, 16
    $region21: #{_decode_padded.1} parent=1 // pred_fallthru
      _
    // Predicated region
    $region22: #{_decode_padded.1} parent=1 // pred_check
      _
    $region23: #{_decode_padded.1} parent=1 // pred_check_branch
      %1015 = sbr.rel (0) target = $region25
    $region24: #{_decode_padded.1} parent=1 // pred_region
      %1016 = dma.done [#allocation4], 8192
    $region25: #{_decode_padded.1} parent=1 // pred_fallthru
      _
    %1017 = vsyncpa [#allocation3], 1
    %1018 = vsyncpa [#allocation6], 1
    %1019 = vsyncpa [#allocation4], 1

</llo_original>
